<compile_context>
chip_gen: v7x
topology: tpu7x:2x2x1
jax: 0.10.0
libtpu: 0.0.40
codegen_flags: <defaults>
</compile_context>

<pallas_src>
import jax
import jax.numpy as jnp
from jax.experimental import pallas as pl
from jax.experimental.pallas import tpu as pltpu

SINGLE_BLOCK_MAX_ROWS = 4096      # skip the grid entirely up to a few thousand rows
GRID_BLOCK_CAP_ROWS = 4096        # max rows per grid block (VMEM double-buffer safe)
VMEM_LIMIT_BYTES = 32 * 1024 * 1024


def _round_up(x, m):
    return ((x + m - 1) // m) * m


def policy_net_kernel(x_ref, w1_ref, b1_ref, w2_ref, b2_ref, o_ref):
    """Fused MLP forward: (x @ W1 + b1) -> dropout(identity) -> relu -> @ W2 + b2.

    Layer 1 runs on the VPU (broadcast-MAC) when the contraction is tiny
    (CartPole: K = 4), layer 2 on the MXU with f32 accumulation.  Bias add and
    ReLU stay in f32 (v5e VPU has no bf16 ALUs).
    """
    d_in = x_ref.shape[-1]
    if d_in <= 8:
        # Tiny contraction: VPU broadcast-mul-add; avoids an MXU round-trip.
        xf = x_ref[...].astype(jnp.float32)                    # (B, D_in)
        w1f = w1_ref[...].astype(jnp.float32)                  # (D_in, H)
        h = xf[:, 0:1] * w1f[0:1, :]                           # (B, H) f32
        for k in range(1, d_in):
            h = h + xf[:, k:k + 1] * w1f[k:k + 1, :]
    else:
        h = jnp.dot(x_ref[...].astype(w1_ref.dtype), w1_ref[...],
                    preferred_element_type=jnp.float32)        # (B, H) f32
    h = h + b1_ref[...]                                        # broadcast (1, H)
    # TODO(synk): train-mode dropout (pltpu.prng_seed + pltpu.prng_random_bits
    # with 1/(1-p) scaling) not implemented; eval-mode dropout is the identity.
    h = jnp.maximum(h, 0.0)                                    # ReLU (f32)
    out = jnp.dot(h.astype(w2_ref.dtype), w2_ref[...],
                  preferred_element_type=jnp.float32)          # (B, D_out) f32
    out = out + b2_ref[...]                                    # broadcast (1, D_out)
    o_ref[...] = out.astype(o_ref.dtype)


def prepare_params(w1, b1, w2, b2, matmul_dtype=jnp.bfloat16):
    """One-time parameter prep (do this at init, NOT per forward call).

    PyTorch nn.Linear stores (out, in); transpose to (in, out), cast weights to
    the matmul dtype, keep biases as f32 (1, .) rows.  No output-lane padding:
    the kernel writes the narrow (B, out_dim) logits directly.
    """
    w1_t = jnp.asarray(w1).T.astype(matmul_dtype)               # (D_in, H)
    b1_r = jnp.asarray(b1).reshape(1, -1).astype(jnp.float32)   # (1, H)
    w2_t = jnp.asarray(w2).T.astype(matmul_dtype)               # (H, D_out)
    b2_r = jnp.asarray(b2).reshape(1, -1).astype(jnp.float32)   # (1, D_out)
    return (w1_t, b1_r, w2_t, b2_r)


def policy_net_forward(x, params, *, out_dtype=None):
    """x: (B, D_in) observations; params from prepare_params(). Returns (B, D_out)."""
    w1_t, b1_r, w2_t, b2_r = params
    B, D_in = x.shape
    H = w1_t.shape[1]
    D_out = w2_t.shape[1]
    out_dtype = x.dtype if out_dtype is None else out_dtype

    if B <= SINGLE_BLOCK_MAX_ROWS:
        # Small/medium batch (CartPole scale up to a few thousand vector envs):
        # single resident VMEM block, no grid => no per-step overhead.
        vmem = pl.BlockSpec(memory_space=pltpu.MemorySpace.VMEM)
        return pl.pallas_call(
            policy_net_kernel,
            out_shape=jax.ShapeDtypeStruct((B, D_out), out_dtype),
            in_specs=[vmem] * 5,
            out_specs=vmem,
            compiler_params=pltpu.CompilerParams(
                vmem_limit_bytes=VMEM_LIMIT_BYTES),
        )(x, w1_t, b1_r, w2_t, b2_r)

    # Large batch: 1-D grid over the batch axis.  Block rows ~ cdiv(B, 2) so a
    # v7x megacore gets exactly 2 parallel steps (one per TensorCore); capped
    # for VMEM safety.  cdiv grid handles non-multiple B (the partial last
    # block's padded rows are discarded on store).  Rounded to 256 rows so the
    # block is sublane-tile aligned for any output dtype.
    block_rows = min(GRID_BLOCK_CAP_ROWS, _round_up(pl.cdiv(B, 2), 256))
    grid = (pl.cdiv(B, block_rows),)
    # Weights / biases are constant-index resident blocks (index_map always
    # (0, 0)); leaving them default-buffered is a negligible cost at this size.
    return pl.pallas_call(
        policy_net_kernel,
        out_shape=jax.ShapeDtypeStruct((B, D_out), out_dtype),
        grid=grid,
        in_specs=[
            pl.BlockSpec((block_rows, D_in), lambda i: (i, 0)),
            pl.BlockSpec((D_in, H), lambda i: (0, 0)),
            pl.BlockSpec((1, H), lambda i: (0, 0)),
            pl.BlockSpec((H, D_out), lambda i: (0, 0)),
            pl.BlockSpec((1, D_out), lambda i: (0, 0)),
        ],
        out_specs=pl.BlockSpec((block_rows, D_out), lambda i: (i, 0)),
        compiler_params=pltpu.CompilerParams(
            dimension_semantics=("parallel",),
            vmem_limit_bytes=VMEM_LIMIT_BYTES),
    )(x, w1_t, b1_r, w2_t, b2_r)


def init_params(key, input_dim, hidden_dim, output_dim, dtype=jnp.float32):
    """Deterministic init mimicking PyTorch nn.Linear default (U(-1/sqrt(fan_in), +))."""
    k1, k2, k3, k4 = jax.random.split(key, 4)
    lim1 = 1.0 / (input_dim ** 0.5)
    lim2 = 1.0 / (hidden_dim ** 0.5)
    w1 = jax.random.uniform(k1, (hidden_dim, input_dim), dtype, -lim1, lim1)
    b1 = jax.random.uniform(k2, (hidden_dim,), dtype, -lim1, lim1)
    w2 = jax.random.uniform(k3, (output_dim, hidden_dim), dtype, -lim2, lim2)
    b2 = jax.random.uniform(k4, (output_dim,), dtype, -lim2, lim2)
    return w1, b1, w2, b2


if __name__ == "__main__":
    # CartPole-like dims: obs=4, hidden=32, actions=2; small batch of 8.
    batch, input_dim, hidden_dim, output_dim = 8, 4, 32, 2

    key = jax.random.PRNGKey(0)
    k_x, k_p, k_big = jax.random.split(key, 3)
    x = jax.random.normal(k_x, (batch, input_dim), jnp.float32)
    w1, b1, w2, b2 = init_params(k_p, input_dim, hidden_dim, output_dim)

    # Plain-JAX reference (same math as the PyTorch module in eval mode).
    ref = jnp.maximum(x @ w1.T + b1, 0.0) @ w2.T + b2

    # 1) f32 weight path: tight tolerance vs reference.
    params_f32 = prepare_params(w1, b1, w2, b2, matmul_dtype=jnp.float32)
    out_f32 = jax.block_until_ready(policy_net_forward(x, params_f32))
    assert out_f32.shape == (batch, output_dim)
    assert jnp.allclose(out_f32, ref, atol=1e-5, rtol=1e-5)

    # 2) bf16 weight path (default; MXU-native on v5e/v6e/v7x): loose tolerance.
    params_bf16 = prepare_params(w1, b1, w2, b2)  # bf16 default
    out_bf16 = jax.block_until_ready(policy_net_forward(x, params_bf16))
    assert out_bf16.shape == (batch, output_dim)
    assert jnp.allclose(out_bf16, ref, atol=2e-2, rtol=2e-2)

    # 3) Large, non-multiple batch: exercises the cdiv grid (partial last block),
    #    the parallel batch sharding (2 blocks -> one per v7x TensorCore), and
    #    the optional bf16 output stream.
    big_batch = 5000
    xb = jax.random.normal(k_big, (big_batch, input_dim), jnp.float32)
    ref_b = jnp.maximum(xb @ w1.T + b1, 0.0) @ w2.T + b2
    out_b = jax.block_until_ready(
        policy_net_forward(xb, params_bf16, out_dtype=jnp.bfloat16))
    assert out_b.shape == (big_batch, output_dim)
    assert out_b.dtype == jnp.bfloat16
    assert jnp.allclose(out_b.astype(jnp.float32), ref_b, atol=3e-2, rtol=3e-2)

    print("KERNEL_OK")
</pallas_src>

<mosaic_0001>
module attributes {stable_mosaic.version = 11 : i64} {
  func.func @policy_net_kernel(%arg0: memref<8x4xf32, #tpu.memory_space<vmem>>, %arg1: memref<4x32xf32, #tpu.memory_space<vmem>>, %arg2: memref<1x32xf32, #tpu.memory_space<vmem>>, %arg3: memref<32x2xf32, #tpu.memory_space<vmem>>, %arg4: memref<1x2xf32, #tpu.memory_space<vmem>>, %arg5: memref<8x2xf32, #tpu.memory_space<vmem>>) attributes {dimension_semantics = [], scalar_prefetch = 0 : i64, scratch_operands = 0 : i64, tpu.core_type = #tpu.core_type<tc>} {
    %c0 = arith.constant 0 : index
    %c0_0 = arith.constant 0 : index
    %0 = vector.load %arg0[%c0, %c0_0] : memref<8x4xf32, #tpu.memory_space<vmem>>, vector<8x4xf32>
    %c0_1 = arith.constant 0 : index
    %c0_2 = arith.constant 0 : index
    %1 = vector.load %arg1[%c0_1, %c0_2] : memref<4x32xf32, #tpu.memory_space<vmem>>, vector<4x32xf32>
    %2 = vector.extract_strided_slice %0 {offsets = [0, 0], sizes = [8, 1], strides = [1, 1]} : vector<8x4xf32> to vector<8x1xf32>
    %3 = vector.extract_strided_slice %1 {offsets = [0, 0], sizes = [1, 32], strides = [1, 1]} : vector<4x32xf32> to vector<1x32xf32>
    %4 = vector.broadcast %2 : vector<8x1xf32> to vector<8x32xf32>
    %5 = vector.broadcast %3 : vector<1x32xf32> to vector<8x32xf32>
    %6 = arith.mulf %4, %5 : vector<8x32xf32>
    %7 = vector.extract_strided_slice %0 {offsets = [0, 1], sizes = [8, 1], strides = [1, 1]} : vector<8x4xf32> to vector<8x1xf32>
    %8 = vector.extract_strided_slice %1 {offsets = [1, 0], sizes = [1, 32], strides = [1, 1]} : vector<4x32xf32> to vector<1x32xf32>
    %9 = vector.broadcast %7 : vector<8x1xf32> to vector<8x32xf32>
    %10 = vector.broadcast %8 : vector<1x32xf32> to vector<8x32xf32>
    %11 = arith.mulf %9, %10 : vector<8x32xf32>
    %12 = arith.addf %6, %11 : vector<8x32xf32>
    %13 = vector.extract_strided_slice %0 {offsets = [0, 2], sizes = [8, 1], strides = [1, 1]} : vector<8x4xf32> to vector<8x1xf32>
    %14 = vector.extract_strided_slice %1 {offsets = [2, 0], sizes = [1, 32], strides = [1, 1]} : vector<4x32xf32> to vector<1x32xf32>
    %15 = vector.broadcast %13 : vector<8x1xf32> to vector<8x32xf32>
    %16 = vector.broadcast %14 : vector<1x32xf32> to vector<8x32xf32>
    %17 = arith.mulf %15, %16 : vector<8x32xf32>
    %18 = arith.addf %12, %17 : vector<8x32xf32>
    %19 = vector.extract_strided_slice %0 {offsets = [0, 3], sizes = [8, 1], strides = [1, 1]} : vector<8x4xf32> to vector<8x1xf32>
    %20 = vector.extract_strided_slice %1 {offsets = [3, 0], sizes = [1, 32], strides = [1, 1]} : vector<4x32xf32> to vector<1x32xf32>
    %21 = vector.broadcast %19 : vector<8x1xf32> to vector<8x32xf32>
    %22 = vector.broadcast %20 : vector<1x32xf32> to vector<8x32xf32>
    %23 = arith.mulf %21, %22 : vector<8x32xf32>
    %24 = arith.addf %18, %23 : vector<8x32xf32>
    %c0_3 = arith.constant 0 : index
    %c0_4 = arith.constant 0 : index
    %25 = vector.load %arg2[%c0_3, %c0_4] : memref<1x32xf32, #tpu.memory_space<vmem>>, vector<1x32xf32>
    %26 = vector.broadcast %25 : vector<1x32xf32> to vector<8x32xf32>
    %27 = arith.addf %24, %26 : vector<8x32xf32>
    %cst = arith.constant 0.000000e+00 : f32
    %28 = vector.broadcast %cst : f32 to vector<8x32xf32>
    %29 = arith.maximumf %27, %28 : vector<8x32xf32>
    %c0_5 = arith.constant 0 : index
    %c0_6 = arith.constant 0 : index
    %30 = vector.load %arg3[%c0_5, %c0_6] : memref<32x2xf32, #tpu.memory_space<vmem>>, vector<32x2xf32>
    %cst_7 = arith.constant dense<0.000000e+00> : vector<8x2xf32>
    %31 = tpu.matmul %29, %30, %cst_7 {dimension_numbers = #tpu.dot_dimension_numbers<[1], [0], [0], [1], [0, 0, 1, 1], [], []>} : vector<8x32xf32>, vector<32x2xf32>, vector<8x2xf32> -> vector<8x2xf32>
    %c0_8 = arith.constant 0 : index
    %c0_9 = arith.constant 0 : index
    %32 = vector.load %arg4[%c0_8, %c0_9] : memref<1x2xf32, #tpu.memory_space<vmem>>, vector<1x2xf32>
    %33 = vector.broadcast %32 : vector<1x2xf32> to vector<8x2xf32>
    %34 = arith.addf %31, %33 : vector<8x2xf32>
    %c0_10 = arith.constant 0 : index
    %c0_11 = arith.constant 0 : index
    %35 = vector.load %arg5[%c0_10, %c0_11] : memref<8x2xf32, #tpu.memory_space<vmem>>, vector<8x2xf32>
    tpu.vector_store %arg5[%c0_10, %c0_11], %34 {strides = array<i32>} : memref<8x2xf32, #tpu.memory_space<vmem>>, vector<8x2xf32>,
    return
  }
}

</mosaic_0001>

<llo_original>
// kernel: tpu_custom_call.1
$region0: #{tpu_custom_call.1}
  #allocation0 [shape = 'u32[]', space=smem, size = 0x4, offset = 0x4, fixed_abs, tag = 'smem constant byte address 0x4 - core index']
  #allocation1 [shape = 'u32[144,128]{1,0:T(1,128)}', space=vmem, size = 0x12000, scoped, tag = 'internal scratch']
  %s0 = inlined_call_operand.vmem [shape: f32[8,4], index: 0, kind: input, shape index: {}]
  %s1 = inlined_call_operand.vmem [shape: f32[4,32], index: 1, kind: input, shape index: {}]
  %s2 = inlined_call_operand.vmem [shape: f32[1,32], index: 2, kind: input, shape index: {}]
  %s3 = inlined_call_operand.vmem [shape: f32[32,2], index: 3, kind: input, shape index: {}]
  %s4 = inlined_call_operand.vmem [shape: f32[1,2], index: 4, kind: input, shape index: {}]
  %s5 = inlined_call_operand.vmem [shape: f32[8,2], index: 5, kind: output, shape index: {}]
  %s6 = sld [smem:[#allocation0]]
  $region30: #{tpu_custom_call.1} parent=0
    _
  %s8 = ssub.s32 1, %s6
  %s9 = scalar_select 0, %s8, %s6
  // Predicated region
  $region2: #{tpu_custom_call.1} parent=0 // pred_check
    _
  $region3: #{tpu_custom_call.1} parent=0 // pred_check_branch
    %11 = sbr.rel (0) target = $region5
  $region4: #{tpu_custom_call.1} parent=0 // pred_region
    _
  $region5: #{tpu_custom_call.1} parent=0 // pred_fallthru
    _
  // Predicated region
  $region6: #{tpu_custom_call.1} parent=0 // pred_check
    _
  $region7: #{tpu_custom_call.1} parent=0 // pred_check_branch
    %13 = sbr.rel (0) target = $region9
  $region8: #{tpu_custom_call.1} parent=0 // pred_region
    _
  $region9: #{tpu_custom_call.1} parent=0 // pred_fallthru
    _
  // Predicated region
  $region10: #{tpu_custom_call.1} parent=0 // pred_check
    _
  $region11: #{tpu_custom_call.1} parent=0 // pred_check_branch
    %15 = sbr.rel (0) target = $region13
  $region12: #{tpu_custom_call.1} parent=0 // pred_region
    _
  $region13: #{tpu_custom_call.1} parent=0 // pred_fallthru
    _
  // Predicated region
  $region14: #{tpu_custom_call.1} parent=0 // pred_check
    _
  $region15: #{tpu_custom_call.1} parent=0 // pred_check_branch
    %17 = sbr.rel (0) target = $region17
  $region16: #{tpu_custom_call.1} parent=0 // pred_region
    _
  $region17: #{tpu_custom_call.1} parent=0 // pred_fallthru
    _
  // Predicated region
  $region18: #{tpu_custom_call.1} parent=0 // pred_check
    _
  $region19: #{tpu_custom_call.1} parent=0 // pred_check_branch
    %19 = sbr.rel (0) target = $region21
  $region20: #{tpu_custom_call.1} parent=0 // pred_region
    _
  $region21: #{tpu_custom_call.1} parent=0 // pred_fallthru
    _
  %v20 = vld [vmem:[%s0] sm:$0xff]
  %v21 = vld [vmem:[%s1] sm:$0xf]
  %23 = vset.pattern.permute.xlu0 0
  %24 = vperm.xlu0 %23, %v20
  %v25 = vpop.permute.xlu0 %24
  %v27 = vlaneseq
  %v28 = vshrl.u32 %v27, 7
  %v29 = vsub.s32 0, %v28
  %v30 = vrot.slane %v21, %v29
  %v31 = vmul.f32 %v25, %v30
  %32 = vset.pattern.permute.xlu0 1
  %33 = vperm.xlu0 %32, %v20
  %v34 = vpop.permute.xlu0 %33
  %v36 = vlaneseq
  %v37 = vshrl.u32 %v36, 7
  %v38 = vsub.s32 1, %v37
  %v39 = vrot.slane %v21, %v38
  %v40 = vmul.f32 %v34, %v39
  %v41 = vadd.f32 %v31, %v40
  %42 = vset.pattern.permute.xlu0 2
  %43 = vperm.xlu0 %42, %v20
  %v44 = vpop.permute.xlu0 %43
  %v46 = vlaneseq
  %v47 = vshrl.u32 %v46, 7
  %v48 = vsub.s32 2, %v47
  %v49 = vrot.slane %v21, %v48
  %v50 = vmul.f32 %v44, %v49
  %v51 = vadd.f32 %v41, %v50
  %52 = vset.pattern.permute.xlu0 3
  %53 = vperm.xlu0 %52, %v20
  %v54 = vpop.permute.xlu0 %53
  %v56 = vlaneseq
  %v57 = vshrl.u32 %v56, 7
  %v58 = vsub.s32 3, %v57
  %v59 = vrot.slane %v21, %v58
  %v60 = vmul.f32 %v54, %v59
  %v61 = vadd.f32 %v51, %v60
  %v62 = vld [vmem:[%s2] sm:$0x1]
  %v64 = vlaneseq
  %v65 = vshrl.u32 %v64, 7
  %v66 = vsub.s32 0, %v65
  %v67 = vrot.slane %v62, %v66
  %v69 = vadd.f32 %v61, %v67
  %v70 = vmax.f32 %v69, 0.0
  %v71 = vld [vmem:[%s3] sm:$0xff]
  %v72 = vld [vmem:[%s3 + $0x8] sm:$0xff]
  %v73 = vld [vmem:[%s3 + $0x10] sm:$0xff]
  %v74 = vld [vmem:[%s3 + $0x18] sm:$0xff]
  %v75 = vld [vmem:[%s4] sm:$0x1]
  %v77 = vlaneseq
  %v78 = vshrl.u32 %v77, 7
  %v79 = vsub.s32 0, %v78
  %v80 = vrot.slane %v75, %v79
  %vm82 = vcmask 261120
  %v84 = vsel %vm82, %v70, 0
  %86 = vmatprep.subr.mxu0 0.0
  %87 = vmatpush1.msra.mxu0 %v71
  %88 = vmatprep.subr.mxu0 0.0
  %89 = vmatpush1.msra.mxu0 %v72
  %90 = vmatprep.subr.mxu0 0.0
  %91 = vmatpush1.msra.mxu0 %v73
  %92 = vmatprep.subr.mxu0 0.0
  %93 = vmatpush1.msra.mxu0 %v74
  %94 = vmatprep.subr.mxu0 0.0
  %95 = vmatpush1.msra.mxu0 0.0
  %96 = vmatprep.subr.mxu0 0.0
  %97 = vmatpush1.msra.mxu0 0.0
  %98 = vmatprep.subr.mxu0 0.0
  %99 = vmatpush1.msra.mxu0 0.0
  %100 = vmatprep.subr.mxu0 0.0
  %101 = vmatpush1.msra.mxu0 0.0
  %102 = vmatprep.subr.mxu0 0.0
  %103 = vmatpush1.msra.mxu0 0.0
  %104 = vmatprep.subr.mxu0 0.0
  %105 = vmatpush1.msra.mxu0 0.0
  %106 = vmatprep.subr.mxu0 0.0
  %107 = vmatpush1.msra.mxu0 0.0
  %108 = vmatprep.subr.mxu0 0.0
  %109 = vmatpush1.msra.mxu0 0.0
  %110 = vmatprep.subr.mxu0 0.0
  %111 = vmatpush1.msra.mxu0 0.0
  %112 = vmatprep.subr.mxu0 0.0
  %113 = vmatpush1.msra.mxu0 0.0
  %114 = vmatprep.subr.mxu0 0.0
  %115 = vmatpush1.msra.mxu0 0.0
  %116 = vmatprep.subr.mxu0 0.0
  %117 = vmatpush1.msra.mxu0 0.0
  %118 = vmatprep.subr.mxu0 0.0
  %119 = vmatpush1.msra.mxu0 0.0
  %120 = vmatprep.subr.mxu0 0.0
  %121 = vmatpush1.msra.mxu0 0.0
  %122 = vmatprep.subr.mxu0 0.0
  %123 = vmatpush1.msra.mxu0 0.0
  %124 = vmatprep.subr.mxu0 0.0
  %125 = vmatpush1.msra.mxu0 0.0
  %126 = vmatprep.subr.mxu0 0.0
  %127 = vmatpush1.msra.mxu0 0.0
  %128 = vmatprep.subr.mxu0 0.0
  %129 = vmatpush1.msra.mxu0 0.0
  %130 = vmatprep.subr.mxu0 0.0
  %131 = vmatpush1.msra.mxu0 0.0
  %132 = vmatprep.subr.mxu0 0.0
  %133 = vmatpush1.msra.mxu0 0.0
  %134 = vmatprep.subr.mxu0 0.0
  %135 = vmatpush1.msra.mxu0 0.0
  %136 = vmatprep.subr.mxu0 0.0
  %137 = vmatpush1.msra.mxu0 0.0
  %138 = vmatprep.subr.mxu0 0.0
  %139 = vmatpush1.msra.mxu0 0.0
  %140 = vmatprep.subr.mxu0 0.0
  %141 = vmatpush1.msra.mxu0 0.0
  %142 = vmatprep.subr.mxu0 0.0
  %143 = vmatpush1.msra.mxu0 0.0
  %144 = vmatprep.subr.mxu0 0.0
  %145 = vmatpush1.msra.mxu0 0.0
  %146 = vmatprep.subr.mxu0 0.0
  %147 = vmatpush1.msra.mxu0 0.0
  %148 = vmatprep.subr.mxu0 0.0
  %149 = vmatpush1.msra.mxu0 0.0
  %150 = vmatprep.mubr.f32.mxu0 0.0
  %151 = vmatmul.mubr.f32.gmra.mrb[0].mxu0 %v84
  %v152 = vpop.f32.mrb[0].mxu0
  %v153 = vadd.f32 %v80, %v152
  %v154 = vpop.f32.mrb[0].mxu0
  %155 = vdwg.mxu0
  %vm156 = vcmask 15360
  %157 = vst.msk [vmem:[%s5] sm:$0xff] %vm156, %v153
  // Predicated region
  $region22: #{tpu_custom_call.1} parent=0 // pred_check
    _
  $region23: #{tpu_custom_call.1} parent=0 // pred_check_branch
    %159 = sbr.rel (0) target = $region25
  $region24: #{tpu_custom_call.1} parent=0 // pred_region
    _
  $region25: #{tpu_custom_call.1} parent=0 // pred_fallthru
    _
  // Predicated region
  $region26: #{tpu_custom_call.1} parent=0 // pred_check
    _
  $region27: #{tpu_custom_call.1} parent=0 // pred_check_branch
    %161 = sbr.rel (0) target = $region29
  $region28: #{tpu_custom_call.1} parent=0 // pred_region
    _
  $region29: #{tpu_custom_call.1} parent=0 // pred_fallthru
    _

</llo_original>
